<compile_context>
chip_gen: v5e
topology: v5e:2x2
jax: 0.10.0
libtpu: 0.0.40
codegen_flags: <defaults>
</compile_context>

<pallas_src>
import functools
import math

import jax
import jax.numpy as jnp
from jax import lax
from jax.experimental import pallas as pl
from jax.experimental.pallas import tpu as pltpu


def _round_up(x, m):
    return (x + m - 1) // m * m


def _vmem_capacity_bytes():
    try:
        info = pltpu.get_tpu_info()
        for attr in ("vmem_capacity_bytes", "vmem_bytes", "vmem_size_bytes"):
            v = getattr(info, attr, None)
            if v:
                return int(v)
    except Exception:
        pass
    return 64 * 1024 * 1024  # conservative default (v7x per-TensorCore VMEM)


def _lora_kernel(x_ref, at_ref, bt_ref, o_ref, acc_ref, *, compute_dtype):
    # x_ref : (tm, tk)          row x K tile of the flattened input
    # at_ref: (rank, tk)        lora_A.T tile            (lane-dense)
    # bt_ref: (rank, out)       lora_B.T * scaling       (lane-dense, pre-scaled)
    # o_ref : (tm, out)         written on the last K step only
    # acc_ref: (tm, rank) f32   resident accumulator across the K axis
    k = pl.program_id(1)

    @pl.when(k == 0)
    def _():
        acc_ref[...] = jnp.zeros_like(acc_ref)

    # h += x @ A  ("nt" form: contract last dims; the big x tile is untouched,
    # only the tiny weight operand may be transposed by the MXU path).
    acc_ref[...] += lax.dot_general(
        x_ref[...].astype(compute_dtype), at_ref[...],
        dimension_numbers=(((1,), (1,)), ((), ())),
        preferred_element_type=jnp.float32)

    # dropout (eval/inference mode) -> identity

    @pl.when(k == pl.num_programs(1) - 1)
    def _():
        out = jnp.dot(acc_ref[...].astype(compute_dtype), bt_ref[...],
                      preferred_element_type=jnp.float32)
        o_ref[...] = out.astype(o_ref.dtype)


def _choose_tiling(M, in_features, out_features, rank,
                   x_item, o_item, w_item, budget, tm_max):
    """Pick (tm, tk): largest row tile within the VMEM budget, >=2 row steps
    when possible (v7x megacore), K split only when a single K tile does not
    fit at the target tm."""
    if M < 8:
        tm_goal = M                      # full-extent row block
    else:
        min_steps = 2 if M > 8 else 1    # >= 2 steps so both v7x TCs get work
        tm_goal = max(8, min(tm_max, _round_up(pl.cdiv(M, min_steps), 8)))

    def footprint(tm, tk):
        tile = 2 * tm * (tk * x_item + out_features * o_item)   # dbl-buffered x/out
        weights = 2 * rank * (tk + out_features) * w_item       # resident weights
        acc = tm * 128 * 4                                      # lane-padded scratch
        return tile + weights + acc + (1 << 20)                 # ~1 MiB slack

    if footprint(tm_goal, in_features) <= budget:
        return tm_goal, in_features

    # Try a K split keeping tm_goal.  tk must be a multiple of 128 that divides
    # in_features so no out-of-bounds K columns are ever accumulated.
    if in_features % 128 == 0:
        lane_blocks = in_features // 128
        for nk in range(2, lane_blocks + 1):
            if lane_blocks % nk == 0:
                tk = in_features // nk
                if footprint(tm_goal, tk) <= budget:
                    return tm_goal, tk

    # Fall back: shrink the row tile with the full K extent.
    # TODO(synk): add an N (out_features) split for very large out_features.
    tm = tm_goal
    while tm > 8 and footprint(tm, in_features) > budget:
        tm = max(8, _round_up(tm // 2, 8))
    return tm, in_features


def lora_forward(x, lora_A, lora_B, *, alpha=1, dropout_prob=0.2,
                 compute_dtype=jnp.bfloat16, tm_max=512):
    """LoRA forward: ((x @ lora_A) @ lora_B.T) * (alpha / rank).

    x      : [..., in_features]
    lora_A : [in_features, rank]
    lora_B : [out_features, rank]
    dropout_prob is accepted for signature parity; dropout is identity here
    (inference semantics).  compute_dtype sets the matmul operand dtype
    (accumulation is always f32); jnp.float32 reproduces PyTorch numerics,
    jnp.bfloat16 (default) keeps the rank-4 MXU work above the HBM roofline.
    """
    del dropout_prob  # eval-mode dropout == identity
    in_features, rank = lora_A.shape
    out_features, rank_b = lora_B.shape
    assert rank == rank_b
    scaling = alpha / rank

    orig_shape = x.shape
    x2d = x.reshape(-1, in_features)
    M = x2d.shape[0]
    out_dtype = x.dtype

    # One-time weight prep (outside the grid loop): transpose so the large
    # feature axis is lane-dense, fold alpha/rank into the tiny B weight, and
    # pre-cast to the matmul operand dtype.
    a_t = lora_A.T.astype(compute_dtype)                           # (rank, in)
    b_t = (lora_B.T * jnp.asarray(scaling, lora_B.dtype)).astype(compute_dtype)

    x_item = jnp.dtype(x2d.dtype).itemsize
    o_item = jnp.dtype(out_dtype).itemsize
    w_item = jnp.dtype(compute_dtype).itemsize

    budget = int(0.75 * _vmem_capacity_bytes())   # ~48 MiB v7x, ~96 MiB v5e/v6e
    tm, tk = _choose_tiling(M, in_features, out_features, rank,
                            x_item, o_item, w_item, budget, tm_max)

    grid = (pl.cdiv(M, tm), pl.cdiv(in_features, tk))

    kernel = functools.partial(_lora_kernel, compute_dtype=compute_dtype)

    out2d = pl.pallas_call(
        kernel,
        out_shape=jax.ShapeDtypeStruct((M, out_features), out_dtype),
        grid_spec=pltpu.PrefetchScalarGridSpec(
            num_scalar_prefetch=0,
            grid=grid,
            in_specs=[
                pl.BlockSpec((tm, tk), lambda i, k: (i, k)),
                pl.BlockSpec((rank, tk), lambda i, k: (0, k)),
                pl.BlockSpec((rank, out_features), lambda i, k: (0, 0)),
            ],
            out_specs=pl.BlockSpec((tm, out_features), lambda i, k: (i, 0)),
            scratch_shapes=[pltpu.VMEM((tm, rank), jnp.float32)],
        ),
        compiler_params=pltpu.CompilerParams(
            dimension_semantics=("parallel", "arbitrary"),
            vmem_limit_bytes=budget),
    )(x2d, a_t, b_t)

    return out2d.reshape(*orig_shape[:-1], out_features)


def init_params(key, in_features, out_features, rank=4):
    """Parameter init matching the module's shapes.

    lora_A follows kaiming_uniform_(a=sqrt(5)) semantics for an
    [in_features, rank] tensor.  lora_B is zeros in the PyTorch __init__;
    here we use small random values so the kernel output is non-trivial.
    """
    ka, kb = jax.random.split(key)
    gain = math.sqrt(2.0 / (1.0 + 5.0))
    bound = gain * math.sqrt(3.0 / rank)
    lora_A = jax.random.uniform(
        ka, (in_features, rank), jnp.float32, minval=-bound, maxval=bound)
    lora_B = 0.02 * jax.random.normal(kb, (out_features, rank), jnp.float32)
    return lora_A, lora_B


if __name__ == "__main__":
    key = jax.random.PRNGKey(0)
    kx, kp = jax.random.split(key)

    batch, seq, in_features, out_features, rank, alpha = 2, 8, 32, 64, 4, 1
    x = jax.random.normal(kx, (batch, seq, in_features), jnp.float32)
    lora_A, lora_B = init_params(kp, in_features, out_features, rank)

    # High-precision pure-JAX reference (dropout in eval mode == identity).
    h = jnp.einsum("bsi,ir->bsr", x, lora_A, precision=lax.Precision.HIGHEST)
    ref = jnp.einsum("bsr,or->bso", h, lora_B,
                     precision=lax.Precision.HIGHEST) * (alpha / rank)

    # Exact (f32-operand) path: matches the PyTorch module numerics.
    out_f32 = lora_forward(x, lora_A, lora_B, alpha=alpha,
                           compute_dtype=jnp.float32)
    out_f32 = jax.block_until_ready(out_f32)
    assert out_f32.shape == (batch, seq, out_features)
    assert jnp.allclose(out_f32, ref, atol=1e-4, rtol=1e-4)

    # Default fast path: bf16 MXU operands, f32 accumulation.
    out_bf16 = lora_forward(x, lora_A, lora_B, alpha=alpha)
    out_bf16 = jax.block_until_ready(out_bf16)
    assert out_bf16.shape == (batch, seq, out_features)
    assert jnp.allclose(out_bf16, ref, atol=2e-2, rtol=2e-2)

    print("KERNEL_OK")
</pallas_src>

<mosaic_0001>
module attributes {stable_mosaic.version = 11 : i64} {
  func.func @_lora_kernel(%arg0: i32, %arg1: i32, %arg2: memref<8x32xf32, #tpu.memory_space<vmem>>, %arg3: memref<4x32xf32, #tpu.memory_space<vmem>>, %arg4: memref<4x64xf32, #tpu.memory_space<vmem>>, %arg5: memref<8x64xf32, #tpu.memory_space<vmem>>, %arg6: memref<8x4xf32, #tpu.memory_space<vmem>>) attributes {dimension_semantics = [#tpu.dimension_semantics<parallel>, #tpu.dimension_semantics<arbitrary>], iteration_bounds = array<i64: 2, 1>, scalar_prefetch = 0 : i64, scratch_operands = 1 : i64, tpu.core_type = #tpu.core_type<tc>, window_params = [{transform_indices = @transform_0, window_bounds = array<i64: 8, 32>}, {transform_indices = @transform_1, window_bounds = array<i64: 4, 32>}, {pipeline_mode = #tpu.pipeline_mode<synchronous>, transform_indices = @transform_2, window_bounds = array<i64: 4, 64>}, {transform_indices = @transform_3, window_bounds = array<i64: 8, 64>}]} {
    %c0_i32 = arith.constant 0 : i32
    %0 = arith.cmpi eq, %arg1, %c0_i32 : i32
    %1 = arith.extui %0 : i1 to i32
    %c0_i32_0 = arith.constant 0 : i32
    %2 = arith.cmpi ne, %1, %c0_i32_0 : i32
    scf.if %2 {
      %cst_10 = arith.constant 0.000000e+00 : f32
      %12 = vector.broadcast %cst_10 : f32 to vector<8x4xf32>
      %c0_11 = arith.constant 0 : index
      %c0_12 = arith.constant 0 : index
      %13 = vector.load %arg6[%c0_11, %c0_12] : memref<8x4xf32, #tpu.memory_space<vmem>>, vector<8x4xf32>
      tpu.vector_store %arg6[%c0_11, %c0_12], %12 {strides = array<i32>} : memref<8x4xf32, #tpu.memory_space<vmem>>, vector<8x4xf32>,
    } else {
    }
    %c0 = arith.constant 0 : index
    %c0_1 = arith.constant 0 : index
    %3 = vector.load %arg6[%c0, %c0_1] : memref<8x4xf32, #tpu.memory_space<vmem>>, vector<8x4xf32>
    %c0_2 = arith.constant 0 : index
    %c0_3 = arith.constant 0 : index
    %4 = vector.load %arg2[%c0_2, %c0_3] : memref<8x32xf32, #tpu.memory_space<vmem>>, vector<8x32xf32>
    %c0_4 = arith.constant 0 : index
    %c0_5 = arith.constant 0 : index
    %5 = vector.load %arg3[%c0_4, %c0_5] : memref<4x32xf32, #tpu.memory_space<vmem>>, vector<4x32xf32>
    %cst = arith.constant dense<0.000000e+00> : vector<8x4xf32>
    %6 = tpu.matmul %4, %5, %cst {dimension_numbers = #tpu.dot_dimension_numbers<[1], [1], [0], [0], [0, 0, 1, 0], [], []>} : vector<8x32xf32>, vector<4x32xf32>, vector<8x4xf32> -> vector<8x4xf32>
    %7 = arith.addf %3, %6 : vector<8x4xf32>
    %c0_6 = arith.constant 0 : index
    %c0_7 = arith.constant 0 : index
    %8 = vector.load %arg6[%c0_6, %c0_7] : memref<8x4xf32, #tpu.memory_space<vmem>>, vector<8x4xf32>
    tpu.vector_store %arg6[%c0_6, %c0_7], %7 {strides = array<i32>} : memref<8x4xf32, #tpu.memory_space<vmem>>, vector<8x4xf32>,
    %c0_i32_8 = arith.constant 0 : i32
    %9 = arith.cmpi eq, %arg1, %c0_i32_8 : i32
    %10 = arith.extui %9 : i1 to i32
    %c0_i32_9 = arith.constant 0 : i32
    %11 = arith.cmpi ne, %10, %c0_i32_9 : i32
    scf.if %11 {
      %c0_10 = arith.constant 0 : index
      %c0_11 = arith.constant 0 : index
      %12 = vector.load %arg6[%c0_10, %c0_11] : memref<8x4xf32, #tpu.memory_space<vmem>>, vector<8x4xf32>
      %c0_12 = arith.constant 0 : index
      %c0_13 = arith.constant 0 : index
      %13 = vector.load %arg4[%c0_12, %c0_13] : memref<4x64xf32, #tpu.memory_space<vmem>>, vector<4x64xf32>
      %cst_14 = arith.constant dense<0.000000e+00> : vector<8x64xf32>
      %14 = tpu.matmul %12, %13, %cst_14 {dimension_numbers = #tpu.dot_dimension_numbers<[1], [0], [0], [1], [0, 0, 1, 1], [], []>} : vector<8x4xf32>, vector<4x64xf32>, vector<8x64xf32> -> vector<8x64xf32>
      %c0_15 = arith.constant 0 : index
      %c0_16 = arith.constant 0 : index
      %15 = vector.load %arg5[%c0_15, %c0_16] : memref<8x64xf32, #tpu.memory_space<vmem>>, vector<8x64xf32>
      tpu.vector_store %arg5[%c0_15, %c0_16], %14 {strides = array<i32>} : memref<8x64xf32, #tpu.memory_space<vmem>>, vector<8x64xf32>,
    } else {
    }
    return
  }
  func.func @transform_0(%arg0: i32, %arg1: i32) -> (i32, i32) {
    %c0_i32 = arith.constant 0 : i32
    return %arg0, %arg1 : i32, i32
  }
  func.func @transform_1(%arg0: i32, %arg1: i32) -> (i32, i32) {
    %c0_i32 = arith.constant 0 : i32
    %c0_i32_0 = arith.constant 0 : i32
    return %c0_i32, %arg1 : i32, i32
  }
  func.func @transform_2(%arg0: i32, %arg1: i32) -> (i32, i32) {
    %c0_i32 = arith.constant 0 : i32
    %c0_i32_0 = arith.constant 0 : i32
    %c0_i32_1 = arith.constant 0 : i32
    return %c0_i32, %c0_i32_0 : i32, i32
  }
  func.func @transform_3(%arg0: i32, %arg1: i32) -> (i32, i32) {
    %c0_i32 = arith.constant 0 : i32
    %c0_i32_0 = arith.constant 0 : i32
    return %arg0, %c0_i32 : i32, i32
  }
}

</mosaic_0001>

<llo_original>
// kernel: tpu_custom_call.1
$region0: #{tpu_custom_call.1}
  #allocation0 [shape = 'u32[]', space=smem, size = 0x4, offset = 0x4, fixed_abs, tag = 'smem constant byte address 0x4 - core index']
  #allocation1 [shape = 'u32[72,128]{1,0:T(1,128)}', space=vmem, size = 0x9000, scoped, tag = 'internal scratch']
  #allocation2 [shape = 'f32[8,4]{1,0:T(8,128)}', space=vmem, size = 0x1000, scoped, tag = 'scratch operand']
  %s0 = inlined_call_operand.hbm [shape: f32[16,32], index: 0, kind: input, shape index: {}]
  %s1 = inlined_call_operand.hbm [shape: f32[4,32], index: 1, kind: input, shape index: {}]
  %s2 = inlined_call_operand.hbm [shape: f32[4,64], index: 2, kind: input, shape index: {}]
  %s3 = inlined_call_operand.hbm [shape: f32[16,64], index: 3, kind: output, shape index: {}]
  %s4 = sld [smem:[#allocation0]]
  $region65: #{tpu_custom_call.1} parent=0
    _
  %s6 = ssub.s32 1, %s4
  %s7 = scalar_select 0, %s6, %s4
  $region1: #{tpu_custom_call.1} parent=0
    #allocation3 [shape = 'u8[8192]{0}', space=vmem, size = 0x2000, scoped, tag = 'input window, operand 0']
    #allocation4 [shape = 's32[2]{0}', space=sflag, size = 0x8, scoped, tag = 'scoped memory for tpu_custom_call.1']
    #allocation5 [shape = 's32[2]{0}', space=sflag, size = 0x8, scoped, tag = 'scoped memory for tpu_custom_call.1']
    #allocation6 [shape = 'u8[2048]{0}', space=vmem, size = 0x800, scoped, tag = 'input window, operand 1, single buffered']
    #allocation7 [shape = 's32[1]{0}', space=sflag, size = 0x4, scoped, tag = 'scoped memory for tpu_custom_call.1']
    #allocation8 [shape = 'u8[2048]{0}', space=vmem, size = 0x800, scoped, tag = 'input window, operand 2, single buffered']
    #allocation9 [shape = 'u8[8192]{0}', space=vmem, size = 0x2000, scoped, tag = 'output window, operand 0']
    %8 = vsyncpa [#allocation4], 0
    %s9 = scalar_lea.sflag [#allocation4], 1
    %10 = vsyncpa %s9, 0
    %11 = vsyncpa [#allocation7], 0
    %12 = vsyncpa [#allocation5], 0
    %s13 = scalar_lea.sflag [#allocation5], 1
    %14 = vsyncpa %s13, 0
    loop: start=0, step=1, limit=4
    $region2: #{tpu_custom_call.1} parent=1 // loop_pre_header
      _
    $region3: #{tpu_custom_call.1} parent=1 // loop_header
      %s16 = sphi 0, %s20
      %p17 = scmp.ge.s32.totalorder %s16, 4
      %s23 = sphi 0, %s35
      %s24 = sphi 0, %s31
      %s25 = sphi 0, %s23
      %s26 = sphi 0, %s24
      %s27 = sphi 0, %s25
      %s28 = sphi 0, %s26
      %s40 = sphi 0, %s42
      %s43 = sphi 0, %s40
      %s44 = sphi 0, %s43
      %s60 = sphi 0, %s44
      %s66 = sphi 0, %s68
      %s69 = sphi 0, %s66
      %s70 = sphi 0, %s69
      %s86 = sphi 0, %s70
      %s90 = sphi 0, %s90
      %s92 = sphi 0, %s90
      %s93 = sphi 0, %s92
      %s107 = sphi 0, %s93
      %s113 = sphi 0, %s115
      %s116 = sphi 0, %s113
      %s117 = sphi 0, %s116
      %s133 = sphi 0, %s117
    $region4: #{tpu_custom_call.1} parent=1 // loop_header_branch
      %19 = sbr.rel (%p17) target = $region8
    $region5: #{tpu_custom_call.1} parent=1 // loop_body
      %s21 = ssub.s32 %s16, 1
      %s22 = ssub.s32 %s16, 2
      %s29 = sadd.s32 1, %s24
      %p30 = scmp.ge.s32.totalorder %s29, 1
      %s31 = scalar_select %p30, 0, %s29
      %s32 = sadd.s32 1, %s23
      %s33 = scalar_select %p30, %s32, %s23
      %p34 = scmp.ge.s32.totalorder %s33, 2
      %s35 = scalar_select %p34, 0, %s33
      %s36 = ssub.s32 %s23, %s35
      %s37 = ssub.s32 %s24, %s31
      %s38 = sor.u32 %s36, %s37
      %p39 = scmp.eq.s32.totalorder %s38, 0
      %s41 = sadd.s32 %s40, 1
      %s42 = scalar_select %p39, %s40, %s41
      %p45 = pneg %p39
      %p46 = scmp.eq.s32.totalorder %s16, 1
      %p47 = por %p45, %p46
      %p48 = scmp.ne.s32.totalorder %s40, %s43
      %p49 = scmp.eq.s32.totalorder %s16, 0
      %p50 = por %p48, %p49
      %p51 = scmp.ne.s32.totalorder %s40, %s43
      %p52 = scmp.eq.s32.totalorder %s21, 1
      %p53 = por %p51, %p52
      %p54 = scmp.ne.s32.totalorder %s43, %s44
      %p55 = scmp.eq.s32.totalorder %s21, 0
      %p56 = por %p54, %p55
      %p57 = scmp.ne.s32.totalorder %s43, %s44
      %p58 = scmp.eq.s32.totalorder %s22, 1
      %p59 = por %p57, %p58
      %p61 = scmp.ne.s32.totalorder %s44, %s60
      %p62 = scmp.eq.s32.totalorder %s22, 0
      %p63 = por %p61, %p62
      %s64 = ssub.s32 %s24, %s31
      %p65 = scmp.eq.s32.totalorder %s64, 0
      %s67 = sadd.s32 %s66, 1
      %s68 = scalar_select %p65, %s66, %s67
      %p71 = pneg %p65
      %p72 = scmp.eq.s32.totalorder %s16, 1
      %p73 = por %p71, %p72
      %p74 = scmp.ne.s32.totalorder %s66, %s69
      %p75 = scmp.eq.s32.totalorder %s16, 0
      %p76 = por %p74, %p75
      %p77 = scmp.ne.s32.totalorder %s66, %s69
      %p78 = scmp.eq.s32.totalorder %s21, 1
      %p79 = por %p77, %p78
      %p80 = scmp.ne.s32.totalorder %s69, %s70
      %p81 = scmp.eq.s32.totalorder %s21, 0
      %p82 = por %p80, %p81
      %p83 = scmp.ne.s32.totalorder %s69, %s70
      %p84 = scmp.eq.s32.totalorder %s22, 1
      %p85 = por %p83, %p84
      %p87 = scmp.ne.s32.totalorder %s70, %s86
      %p88 = scmp.eq.s32.totalorder %s22, 0
      %p89 = por %p87, %p88
      %s91 = sadd.s32 %s90, 1
      %p94 = scmp.eq.s32.totalorder %s16, 1
      %p95 = scmp.ne.s32.totalorder %s90, %s92
      %p96 = scmp.eq.s32.totalorder %s16, 0
      %p97 = por %p95, %p96
      %p98 = scmp.ne.s32.totalorder %s90, %s92
      %p99 = scmp.eq.s32.totalorder %s21, 1
      %p100 = por %p98, %p99
      %p101 = scmp.ne.s32.totalorder %s92, %s93
      %p102 = scmp.eq.s32.totalorder %s21, 0
      %p103 = por %p101, %p102
      %p104 = scmp.ne.s32.totalorder %s92, %s93
      %p105 = scmp.eq.s32.totalorder %s22, 1
      %p106 = por %p104, %p105
      %p108 = scmp.ne.s32.totalorder %s93, %s107
      %p109 = scmp.eq.s32.totalorder %s22, 0
      %p110 = por %p108, %p109
      %s111 = ssub.s32 %s23, %s35
      %p112 = scmp.eq.s32.totalorder %s111, 0
      %s114 = sadd.s32 %s113, 1
      %s115 = scalar_select %p112, %s113, %s114
      %p118 = pneg %p112
      %p119 = scmp.eq.s32.totalorder %s16, 1
      %p120 = por %p118, %p119
      %p121 = scmp.ne.s32.totalorder %s113, %s116
      %p122 = scmp.eq.s32.totalorder %s16, 0
      %p123 = por %p121, %p122
      %p124 = scmp.ne.s32.totalorder %s113, %s116
      %p125 = scmp.eq.s32.totalorder %s21, 1
      %p126 = por %p124, %p125
      %p127 = scmp.ne.s32.totalorder %s116, %s117
      %p128 = scmp.eq.s32.totalorder %s21, 0
      %p129 = por %p127, %p128
      %p130 = scmp.ne.s32.totalorder %s116, %s117
      %p131 = scmp.eq.s32.totalorder %s22, 1
      %p132 = por %p130, %p131
      %p134 = scmp.ne.s32.totalorder %s117, %s133
      %p135 = scmp.eq.s32.totalorder %s22, 0
      %p136 = por %p134, %p135
      %p137 = scmp.le.s32.totalorder 1, %s16
      %p138 = scmp.lt.s32.totalorder %s16, 3
      %p139 = pnand %p137, %p138
      %p140 = pneg %p139
      // Predicated region
      $region9: #{tpu_custom_call.1} parent=5 // pred_check
        _
      $region10: #{tpu_custom_call.1} parent=5 // pred_check_branch
        %142 = sbr.rel (%p139) target = $region12
      $region11: #{tpu_custom_call.1} parent=5 // pred_region
        %s143 = ssub.s32 %s16, 1
        // Predicated region
        $region13: #{tpu_custom_call.1} parent=11 // pred_check
          %p144 = pneg %p82
        $region14: #{tpu_custom_call.1} parent=11 // pred_check_branch
          %146 = sbr.rel (%p144) target = $region16
        $region15: #{tpu_custom_call.1} parent=11 // pred_region
          %148 = vsyncadd [#allocation7], 0
          %s149 = smul.addr %s26, 4
          %s150 = scalar_lea.hbm %s1, %s149
          %s152 = sshll.u32 %s150, 4
          %s153 = int_to_ptr.hbm [resolvable:$true] %s152
          %s154 = sshll.u32 [#allocation6], 4
          %s155 = int_to_ptr.vmem [resolvable:$true] %s154
          %157 = dma.hbm_to_vmem [thread:$0]  %s153, 64, %s155, [#allocation7]
        $region16: #{tpu_custom_call.1} parent=11 // pred_fallthru
          _
        // Predicated region
        $region17: #{tpu_custom_call.1} parent=11 // pred_check
          %p158 = pneg %p103
        $region18: #{tpu_custom_call.1} parent=11 // pred_check_branch
          %160 = sbr.rel (%p158) target = $region20
        $region19: #{tpu_custom_call.1} parent=11 // pred_region
          %162 = vsyncadd [#allocation7], 0
          %s164 = sshll.u32 %s2, 4
          %s165 = int_to_ptr.hbm [resolvable:$true] %s164
          %s166 = sshll.u32 [#allocation8], 4
          %s167 = int_to_ptr.vmem [resolvable:$true] %s166
          %169 = dma.hbm_to_vmem [thread:$0]  %s165, 64, %s167, [#allocation7]
        $region20: #{tpu_custom_call.1} parent=11 // pred_fallthru
          _
      $region12: #{tpu_custom_call.1} parent=5 // pred_fallthru
        _
      %p170 = scmp.lt.s32.totalorder %s16, 2
      // Predicated region
      $region21: #{tpu_custom_call.1} parent=5 // pred_check
        %p171 = pneg %p170
      $region22: #{tpu_custom_call.1} parent=5 // pred_check_branch
        %173 = sbr.rel (%p171) target = $region24
      $region23: #{tpu_custom_call.1} parent=5 // pred_region
        // Predicated region
        $region25: #{tpu_custom_call.1} parent=23 // pred_check
          %p174 = pneg %p50
        $region26: #{tpu_custom_call.1} parent=23 // pred_check_branch
          %176 = sbr.rel (%p174) target = $region28
        $region27: #{tpu_custom_call.1} parent=23 // pred_region
          %s177 = sand.u32 %s40, 1
          %s178 = scalar_lea.sflag [#allocation4], %s177
          %s179 = sand.u32 %s40, 1
          %s180 = smul.addr %s179, 8
          %s181 = scalar_lea.vmem [#allocation3], %s180
          %183 = vsyncadd %s178, 0
          %s184 = sadd.s32 %s24, %s23
          %s185 = smul.addr %s184, 8
          %s186 = scalar_lea.hbm %s0, %s185
          %s188 = sshll.u32 %s186, 4
          %s189 = int_to_ptr.hbm [resolvable:$true] %s188
          %s190 = sshll.u32 %s181, 4
          %s191 = int_to_ptr.vmem [resolvable:$true] %s190
          %193 = dma.hbm_to_vmem [thread:$0]  %s189, 128, %s191, %s178
        $region28: #{tpu_custom_call.1} parent=23 // pred_fallthru
          _
      $region24: #{tpu_custom_call.1} parent=5 // pred_fallthru
        _
      %p194 = scmp.le.s32.totalorder 1, %s16
      %p195 = scmp.lt.s32.totalorder %s16, 3
      %p196 = pnand %p194, %p195
      %p197 = pneg %p196
      // Predicated region
      $region29: #{tpu_custom_call.1} parent=5 // pred_check
        _
      $region30: #{tpu_custom_call.1} parent=5 // pred_check_branch
        %199 = sbr.rel (%p196) target = $region32
      $region31: #{tpu_custom_call.1} parent=5 // pred_region
        %s200 = ssub.s32 %s16, 1
        %s201 = sand.u32 %s43, 1
        %s202 = scalar_lea.sflag [#allocation4], %s201
        %s203 = sand.u32 %s43, 1
        %s204 = smul.addr %s203, 8
        %s205 = scalar_lea.vmem [#allocation3], %s204
        // Predicated region
        $region33: #{tpu_custom_call.1} parent=31 // pred_check
          %p206 = pneg %p56
        $region34: #{tpu_custom_call.1} parent=31 // pred_check_branch
          %208 = sbr.rel (%p206) target = $region36
        $region35: #{tpu_custom_call.1} parent=31 // pred_region
          %210 = dma.done %s202, 128
        $region36: #{tpu_custom_call.1} parent=31 // pred_fallthru
          _
        // Predicated region
        $region37: #{tpu_custom_call.1} parent=31 // pred_check
          %p211 = pneg %p82
        $region38: #{tpu_custom_call.1} parent=31 // pred_check_branch
          %213 = sbr.rel (%p211) target = $region40
        $region39: #{tpu_custom_call.1} parent=31 // pred_region
          %215 = dma.done [#allocation7], 64
        $region40: #{tpu_custom_call.1} parent=31 // pred_fallthru
          _
        // Predicated region
        $region41: #{tpu_custom_call.1} parent=31 // pred_check
          %p216 = pneg %p103
        $region42: #{tpu_custom_call.1} parent=31 // pred_check_branch
          %218 = sbr.rel (%p216) target = $region44
        $region43: #{tpu_custom_call.1} parent=31 // pred_region
          %220 = dma.done [#allocation7], 64
        $region44: #{tpu_custom_call.1} parent=31 // pred_fallthru
          _
        %s221 = sand.u32 %s43, 1
        %s222 = scalar_lea.sflag [#allocation4], %s221
        %s223 = sand.u32 %s43, 1
        %s224 = smul.addr %s223, 8
        %s225 = scalar_lea.vmem [#allocation3], %s224
        %p226 = pneg %p56
        %p227 = pneg %p53
        %p228 = pneg %p82
        %p229 = pneg %p79
        %p230 = pneg %p103
        %p231 = pneg %p100
        %p232 = pneg %p129
        %p233 = pneg %p126
        %s234 = sand.u32 %s116, 1
        %s235 = scalar_lea.sflag [#allocation5], %s234
        %s236 = sand.u32 %s116, 1
        %s237 = smul.addr %s236, 8
        %s238 = scalar_lea.vmem [#allocation9], %s237
        %p239 = scmp.eq.s32.totalorder %s26, 0
        // Predicated region
        $region45: #{tpu_custom_call.1} parent=31 // pred_check
          %p240 = pneg %p239
        $region46: #{tpu_custom_call.1} parent=31 // pred_check_branch
          %242 = sbr.rel (%p240) target = $region48
        $region47: #{tpu_custom_call.1} parent=31 // pred_region
          %vm243 = vcmask 31744
          %244 = vst.msk [vmem:[#allocation2] sm:$0xff] %vm243, 0.0
        $region48: #{tpu_custom_call.1} parent=31 // pred_fallthru
          _
        %v245 = vld [vmem:[#allocation2] sm:$0xff]
        %v246 = vld [vmem:[%s205] sm:$0xff]
        %v247 = vld [vmem:[#allocation6] sm:$0xf]
        %vm248 = vcmask 261120
        %v250 = vsel %vm248, %v246, 0
        %v253 = vsel %vm248, %v247, 0
        %255 = vmatpush.xpose.msra.mxu0 0.0
        %256 = vmatpush.xpose.msra.mxu0 0.0
        %257 = vmatpush.xpose.msra.mxu0 0.0
        %258 = vmatpush.xpose.msra.mxu0 0.0
        %259 = vmatpush.xpose.msra.mxu0 0.0
        %260 = vmatpush.xpose.msra.mxu0 0.0
        %261 = vmatpush.xpose.msra.mxu0 0.0
        %262 = vmatpush.xpose.msra.mxu0 0.0
        %263 = vmatpush.xpose.msra.mxu0 0.0
        %264 = vmatpush.xpose.msra.mxu0 0.0
        %265 = vmatpush.xpose.msra.mxu0 0.0
        %266 = vmatpush.xpose.msra.mxu0 0.0
        %267 = vmatpush.xpose.msra.mxu0 0.0
        %268 = vmatpush.xpose.msra.mxu0 0.0
        %269 = vmatpush.xpose.msra.mxu0 0.0
        %270 = vmatpush.xpose.msra.mxu0 %v253
        %271 = vmatmul.f32.gmra.mxu0 %v250
        %v272 = vpop.f32.mrf.mxu0
        %v273 = vadd.f32 0.0, %v272
        %274 = vdwg.mxu0
        %v275 = vadd.f32 %v245, %v273
        %vm276 = vcmask 31744
        %277 = vst.msk [vmem:[#allocation2] sm:$0xff] %vm276, %v275
        // Predicated region
        $region49: #{tpu_custom_call.1} parent=31 // pred_check
          %p278 = pneg %p239
        $region50: #{tpu_custom_call.1} parent=31 // pred_check_branch
          %280 = sbr.rel (%p278) target = $region52
        $region51: #{tpu_custom_call.1} parent=31 // pred_region
          %v281 = vld [vmem:[#allocation2] sm:$0xff]
          %v282 = vld [vmem:[#allocation8] sm:$0xf]
          %v284 = vsel %vm276, %v281, 0
          %vm286 = vcmask 1043456
          %v288 = vsel %vm286, %v282, 0
          %290 = vmatpush.msra.mxu0 0.0
          %291 = vmatpush.msra.mxu0 0.0
          %292 = vmatpush.msra.mxu0 0.0
          %293 = vmatpush.msra.mxu0 0.0
          %294 = vmatpush.msra.mxu0 0.0
          %295 = vmatpush.msra.mxu0 0.0
          %296 = vmatpush.msra.mxu0 0.0
          %297 = vmatpush.msra.mxu0 0.0
          %298 = vmatpush.msra.mxu0 0.0
          %299 = vmatpush.msra.mxu0 0.0
          %300 = vmatpush.msra.mxu0 0.0
          %301 = vmatpush.msra.mxu0 0.0
          %302 = vmatpush.msra.mxu0 0.0
          %303 = vmatpush.msra.mxu0 0.0
          %304 = vmatpush.msra.mxu0 0.0
          %305 = vmatpush.msra.mxu0 %v288
          %306 = vmatmul.f32.gmra.mxu0 %v284
          %v307 = vpop.f32.mrf.mxu0
          %v308 = vadd.f32 0.0, %v307
          %309 = vdwg.mxu0
          %vm310 = vcmask 523264
          %311 = vst.msk [vmem:[%s238] sm:$0xff] %vm310, %v308
        $region52: #{tpu_custom_call.1} parent=31 // pred_fallthru
          _
        %s312 = sand.u32 %s116, 1
        %s313 = scalar_lea.sflag [#allocation5], %s312
        %s314 = sand.u32 %s116, 1
        %s315 = smul.addr %s314, 8
        %s316 = scalar_lea.vmem [#allocation9], %s315
        // Predicated region
        $region53: #{tpu_custom_call.1} parent=31 // pred_check
          %p317 = pneg %p126
        $region54: #{tpu_custom_call.1} parent=31 // pred_check_branch
          %319 = sbr.rel (%p317) target = $region56
        $region55: #{tpu_custom_call.1} parent=31 // pred_region
          %321 = vsyncadd %s313, 0
          %s322 = smul.addr %s25, 8
          %s323 = scalar_lea.hbm %s3, %s322
          %s325 = sshll.u32 %s316, 4
          %s326 = int_to_ptr.vmem [resolvable:$true] %s325
          %s327 = sshll.u32 %s323, 4
          %s328 = int_to_ptr.hbm [resolvable:$true] %s327
          %330 = dma.vmem_to_hbm [thread:$0]  %s326, 128, %s328, %s313
        $region56: #{tpu_custom_call.1} parent=31 // pred_fallthru
          _
      $region32: #{tpu_custom_call.1} parent=5 // pred_fallthru
        _
      %p331 = scmp.le.s32.totalorder 2, %s16
      // Predicated region
      $region57: #{tpu_custom_call.1} parent=5 // pred_check
        %p332 = pneg %p331
      $region58: #{tpu_custom_call.1} parent=5 // pred_check_branch
        %334 = sbr.rel (%p332) target = $region60
      $region59: #{tpu_custom_call.1} parent=5 // pred_region
        %s335 = ssub.s32 %s16, 2
        // Predicated region
        $region61: #{tpu_custom_call.1} parent=59 // pred_check
          %p336 = pneg %p132
        $region62: #{tpu_custom_call.1} parent=59 // pred_check_branch
          %338 = sbr.rel (%p336) target = $region64
        $region63: #{tpu_custom_call.1} parent=59 // pred_region
          %s339 = sand.u32 %s117, 1
          %s340 = scalar_lea.sflag [#allocation5], %s339
          %s341 = sand.u32 %s117, 1
          %s342 = smul.addr %s341, 8
          %s343 = scalar_lea.vmem [#allocation9], %s342
          %345 = dma.done %s340, 128
        $region64: #{tpu_custom_call.1} parent=59 // pred_fallthru
          _
      $region60: #{tpu_custom_call.1} parent=5 // pred_fallthru
        _
    $region6: #{tpu_custom_call.1} parent=1 // loop_footer
      %s20 = sadd.s32 1, %s16
    $region7: #{tpu_custom_call.1} parent=1 // loop_footer_branch
      %15 = sbr.rel target = $region3
    $region8: #{tpu_custom_call.1} parent=1 // loop_exit
      _
    %346 = vsyncpa [#allocation4], 1
    %s347 = scalar_lea.sflag [#allocation4], 1
    %348 = vsyncpa %s347, 1
    %349 = vsyncpa [#allocation7], 1
    %350 = vsyncpa [#allocation5], 1
    %s351 = scalar_lea.sflag [#allocation5], 1
    %352 = vsyncpa %s351, 1

</llo_original>
